<compile_context>
chip_gen: v5e
topology: v5e:2x2
jax: 0.10.0
libtpu: 0.0.40
codegen_flags: <defaults>
</compile_context>

<pallas_src>
import functools

import jax
import jax.numpy as jnp
from jax import lax
from jax.experimental import pallas as pl
from jax.experimental.pallas import tpu as pltpu


def _sepconv_kernel(*refs, width, chunk, halo, cg, has_halo):
    """One (batch, row-tile) grid step.

    refs (with halo):    x, xl, xr, col, dw, pw, shift, out, slab, rhs
    refs (without halo): x,          col, dw, pw, shift, out, slab, rhs

    x:     (1, Cin, TS)          current spatial tile (flat, row-major H*W order)
    xl/xr: (1, Cin, HALO)        flat blocks just before / after the tile (clamped)
    col:   (1, CHUNK) int32      w-coordinate of every lane of a chunk
    dw:    (Cin, 9) f32          depthwise weights, tap-major (kh*3 + kw)
    pw:    (Cout, Cin)           pointwise weights with BN scale pre-folded
    shift: (Cout, 1) f32         folded BN shift (includes pointwise bias)
    out:   (1, Cout, TS)
    slab:  (Cin, TS + 2*HALO)    compute-dtype VMEM scratch [left halo | tile | right halo]
    rhs:   (Cin, CHUNK)          mxu-dtype per-chunk matmul RHS scratch
    """
    if has_halo:
        (x_ref, xl_ref, xr_ref, col_ref, dw_ref, pw_ref, shift_ref,
         o_ref, slab_ref, rhs_ref) = refs
    else:
        (x_ref, col_ref, dw_ref, pw_ref, shift_ref,
         o_ref, slab_ref, rhs_ref) = refs
        xl_ref = xr_ref = None

    cin, ts = x_ref.shape[1], x_ref.shape[2]
    w = width
    sdt = slab_ref.dtype
    n_chunks = ts // chunk
    n_groups = cin // cg

    first_tile = pl.program_id(1) == 0
    last_tile = pl.program_id(1) == pl.num_programs(1) - 1

    # Assemble [left halo | tile | right halo] once, in the (bf16 by default) slab dtype.
    slab_ref[:, halo:halo + ts] = x_ref[0].astype(sdt)
    if has_halo:
        slab_ref[:, :halo] = xl_ref[0].astype(sdt)
        slab_ref[:, halo + ts:] = xr_ref[0].astype(sdt)
    else:
        # Single-tile image: the halo rows do not exist; zero the pads (reads are masked).
        zeros_pad = jnp.zeros((cin, halo), sdt)
        slab_ref[:, :halo] = zeros_pad
        slab_ref[:, halo + ts:] = zeros_pad

    # Hoisted masks: identical for every chunk because CHUNK % W == 0.
    col = col_ref[...]                                      # (1, CHUNK) w coordinate
    idx = lax.broadcasted_iota(jnp.int32, (1, chunk), 1)    # position within a chunk
    col_ok_l = col > 0                                      # column to the left exists
    col_ok_r = col < w - 1                                  # column to the right exists

    for c in range(n_chunks):
        cs = c * chunk
        # The image's first / last row can only live in the first / last chunk of the
        # first / last tile, so the row-existence masks are only built where needed.
        need_top = c == 0
        need_bot = c == n_chunks - 1
        if need_top:
            row_ok_top = jnp.logical_not(jnp.logical_and(first_tile, idx < w))
        if need_bot:
            row_ok_bot = jnp.logical_not(jnp.logical_and(last_tile, idx >= chunk - w))

        for g in range(n_groups):
            g0 = g * cg
            dwg = dw_ref[g0:g0 + cg, :]                     # (cg, 9) f32 taps
            acc = None                                      # (cg, CHUNK) f32, vreg-resident
            for kh in range(3):
                dh = kh - 1
                base = halo + dh * w + cs
                # Single slab read per kh (dc = 0); dc = +-1 come from XLU rolls below.
                t0 = slab_ref[g0:g0 + cg, base:base + chunk].astype(jnp.float32)
                if dh == -1 and need_top:
                    t0 = jnp.where(row_ok_top, t0, 0.0)
                elif dh == 1 and need_bot:
                    t0 = jnp.where(row_ok_bot, t0, 0.0)
                terms = (
                    # dc = 0 (no column mask needed)
                    t0 * dwg[:, 3 * kh + 1:3 * kh + 2],
                    # dc = -1: value from lane i-1 (same row; wrap lanes are col-masked)
                    jnp.where(col_ok_l, pltpu.roll(t0, 1, 1), 0.0)
                    * dwg[:, 3 * kh:3 * kh + 1],
                    # dc = +1: value from lane i+1 (roll by CHUNK-1 == -1 circularly)
                    jnp.where(col_ok_r, pltpu.roll(t0, chunk - 1, 1), 0.0)
                    * dwg[:, 3 * kh + 2:3 * kh + 3],
                )
                for term in terms:
                    acc = term if acc is None else acc + term

            if n_groups == 1:
                rhs = acc.astype(rhs_ref.dtype)             # feed the chunk straight to MXU
            else:
                rhs_ref[g0:g0 + cg, :] = acc.astype(rhs_ref.dtype)   # single store per group
        if n_groups > 1:
            rhs = rhs_ref[...]

        # Pointwise 1x1 conv (BN scale pre-folded into pw) on the MXU; N = CHUNK is
        # lane-dense, output stores are 128-aligned for typical widths.
        y = jnp.dot(pw_ref[...], rhs, preferred_element_type=jnp.float32)
        o_ref[0, :, cs:cs + chunk] = (y + shift_ref[...]).astype(o_ref.dtype)


def _round_up(v, m):
    return ((v + m - 1) // m) * m


def _pick_spatial_tile(H, W, halo, target_lanes=8192):
    """Whole image if it fits the target (no halo DMA at all); otherwise the largest
    row-aligned, halo-divisible flat tile <= target_lanes."""
    hw = H * W
    if hw <= target_lanes:
        return hw
    cands = [th * W for th in range(1, H) if H % th == 0 and (th * W) % halo == 0]
    cands = [c for c in cands if c < hw]
    if not cands:
        return hw
    within = [c for c in cands if c <= target_lanes]
    return max(within) if within else min(cands)


def _pick_chunk(TS, W, target=512):
    """Largest whole-row chunk that divides TS, prefers 128-lane alignment and <= target."""
    rows = TS // W
    cands = [r * W for r in range(1, rows + 1) if rows % r == 0]
    aligned = [c for c in cands if c % 128 == 0 and c <= target]
    if aligned:
        return max(aligned)
    within = [c for c in cands if c <= target]
    return max(within) if within else min(cands)


def _pick_channel_group(cin, slab_dtype):
    """Channel-group size so the per-chunk accumulator stays vreg-resident; groups of 16
    for a packed (16,128)-tiled bf16 slab, 8 otherwise; fall back to Cin if indivisible."""
    cands = (16, 8) if jnp.dtype(slab_dtype).itemsize == 2 else (8,)
    for cg in cands:
        if cin % cg == 0:
            return cg
    return cin


def separable_conv_block(x, params, *, eps=1e-3, mxu_dtype=jnp.bfloat16,
                         compute_dtype=None, tile_rows=None, interpret=False):
    """x: (N, Cin, H, W) float32. params in PyTorch layouts (see __main__).
    compute_dtype controls the halo-slab storage dtype (default = mxu_dtype).
    Returns (N, Cout, H, W)."""
    dw_w, pw_w, pw_b, bn_gamma, bn_beta, bn_mean, bn_var = params
    N, Cin, H, W = x.shape
    Cout = pw_w.shape[0]
    HW = H * W
    if compute_dtype is None:
        compute_dtype = mxu_dtype

    # Flat-tile geometry: tiles are whole rows; a +-1-row tap is a flat shift of +-W lanes.
    HALO = _round_up(W, 128)
    if tile_rows is not None:
        TS = tile_rows * W
        assert H % tile_rows == 0
    else:
        TS = _pick_spatial_tile(H, W, HALO)
    T = HW // TS
    assert T * TS == HW
    has_halo = T > 1
    if has_halo:
        assert TS % HALO == 0, "tile size must be a multiple of the halo block"
        R = TS // HALO
        NB = HW // HALO

    CHUNK = _pick_chunk(TS, W)
    CG = _pick_channel_group(Cin, compute_dtype)

    # Fold BatchNorm (inference) + pointwise bias: scale goes into the pointwise weights
    # (fold in f32, then a single cast), shift stays as a per-channel add.
    inv_std = lax.rsqrt(bn_var.astype(jnp.float32) + eps)
    scale = bn_gamma.astype(jnp.float32) * inv_std                        # (Cout,)
    shift = (bn_beta.astype(jnp.float32)
             + (pw_b.astype(jnp.float32) - bn_mean.astype(jnp.float32)) * scale)
    pw_k = (pw_w.reshape(Cout, Cin).astype(jnp.float32)
            * scale[:, None]).astype(mxu_dtype)
    shift = shift.reshape(Cout, 1)
    dw_k = dw_w.reshape(Cin, 9).astype(jnp.float32)       # torch (Cin,1,3,3) -> (Cin,9)
    col_map = (jnp.arange(CHUNK, dtype=jnp.int32) % W).reshape(1, CHUNK)

    x_flat = x.reshape(N, Cin, HW)                        # free reshape, stays NCHW in HBM

    common_specs = [
        pl.BlockSpec((1, CHUNK), lambda n, t: (0, 0)),
        pl.BlockSpec((Cin, 9), lambda n, t: (0, 0)),
        pl.BlockSpec((Cout, Cin), lambda n, t: (0, 0)),
        pl.BlockSpec((Cout, 1), lambda n, t: (0, 0)),
    ]
    if has_halo:
        in_specs = [
            pl.BlockSpec((1, Cin, TS), lambda n, t: (n, 0, t)),
            pl.BlockSpec((1, Cin, HALO),
                         lambda n, t: (n, 0, jnp.maximum(t * R - 1, 0))),
            pl.BlockSpec((1, Cin, HALO),
                         lambda n, t: (n, 0, jnp.minimum((t + 1) * R, NB - 1))),
        ] + common_specs
        operands = (x_flat, x_flat, x_flat, col_map, dw_k, pw_k, shift)
    else:
        in_specs = [pl.BlockSpec((1, Cin, TS), lambda n, t: (n, 0, t))] + common_specs
        operands = (x_flat, col_map, dw_k, pw_k, shift)
    out_specs = pl.BlockSpec((1, Cout, TS), lambda n, t: (n, 0, t))

    itc = jnp.dtype(compute_dtype).itemsize
    itm = jnp.dtype(mxu_dtype).itemsize
    f32 = 4
    per_step = (2 * f32 * Cin * TS                              # x double-buffer
                + (4 * f32 * Cin * HALO if has_halo else 0)     # halo double-buffers
                + 2 * f32 * Cout * TS                           # out double-buffer
                + itc * Cin * (TS + 2 * HALO)                   # halo slab
                + itm * Cin * CHUNK                             # matmul RHS scratch
                + f32 * (Cin * 9 + Cout * Cin + Cout + 2 * CHUNK)
                + 2 * f32 * (CG + Cout) * CHUNK)                # live temporaries headroom
    # Cap well below v7x's 64 MiB physical VMEM so the compiler keeps internal headroom.
    vmem_limit = int(min(48 * 2**20, max(16 * 2**20, 2 * per_step)))

    flops = 2 * N * HW * (9 * Cin + Cin * Cout) + 2 * N * HW * Cout
    bytes_accessed = (f32 * N * (Cin + Cout) * HW
                      + (f32 * N * T * 2 * Cin * HALO if has_halo else 0)
                      + f32 * (Cin * 9 + Cout + CHUNK) + itm * Cout * Cin)

    kernel = functools.partial(_sepconv_kernel, width=W, chunk=CHUNK, halo=HALO,
                               cg=CG, has_halo=has_halo)
    out_flat = pl.pallas_call(
        kernel,
        out_shape=jax.ShapeDtypeStruct((N, Cout, HW), x.dtype),
        grid_spec=pltpu.PrefetchScalarGridSpec(
            num_scalar_prefetch=0,
            grid=(N, T),
            in_specs=in_specs,
            out_specs=out_specs,
            scratch_shapes=[
                pltpu.VMEM((Cin, TS + 2 * HALO), compute_dtype),   # halo slab
                pltpu.VMEM((Cin, CHUNK), mxu_dtype),               # per-chunk matmul RHS
            ],
        ),
        compiler_params=pltpu.CompilerParams(
            dimension_semantics=("parallel", "parallel"),
            vmem_limit_bytes=vmem_limit,
        ),
        cost_estimate=pl.CostEstimate(flops=int(flops), transcendentals=0,
                                      bytes_accessed=int(bytes_accessed)),
        interpret=interpret,
    )(*operands)

    return out_flat.reshape(N, Cout, H, W)


def _reference(x, params, eps=1e-3):
    """Plain-JAX reference mirroring the PyTorch module (inference-mode BN)."""
    dw_w, pw_w, pw_b, g, b, m, v = params
    Cin = x.shape[1]
    # depthwise 3x3, stride 1: static same padding == pad 1 on each side
    y = lax.conv_general_dilated(
        x, dw_w, window_strides=(1, 1), padding=((1, 1), (1, 1)),
        dimension_numbers=("NCHW", "OIHW", "NCHW"), feature_group_count=Cin)
    y = lax.conv_general_dilated(
        y, pw_w, window_strides=(1, 1), padding="VALID",
        dimension_numbers=("NCHW", "OIHW", "NCHW"))
    y = y + pw_b[None, :, None, None]
    inv_std = 1.0 / jnp.sqrt(v + eps)
    return ((y - m[None, :, None, None]) * (g * inv_std)[None, :, None, None]
            + b[None, :, None, None])


if __name__ == "__main__":
    N, Cin, H, W = 2, 4, 16, 16
    Cout = 8

    key = jax.random.PRNGKey(0)
    kx, kdw, kpw, kpb, kg, kb, km, kv = jax.random.split(key, 8)

    x = jax.random.normal(kx, (N, Cin, H, W), jnp.float32)

    # PyTorch-layout parameters for SeparableConvBlock(in=4, out=8), inference-mode BN.
    dw_w = 0.2 * jax.random.normal(kdw, (Cin, 1, 3, 3), jnp.float32)   # depthwise, no bias
    pw_w = 0.2 * jax.random.normal(kpw, (Cout, Cin, 1, 1), jnp.float32)
    pw_b = 0.1 * jax.random.normal(kpb, (Cout,), jnp.float32)
    bn_gamma = 1.0 + 0.1 * jax.random.normal(kg, (Cout,), jnp.float32)
    bn_beta = 0.1 * jax.random.normal(kb, (Cout,), jnp.float32)
    bn_mean = 0.1 * jax.random.normal(km, (Cout,), jnp.float32)
    bn_var = jnp.abs(jax.random.normal(kv, (Cout,), jnp.float32)) + 0.5
    params = (dw_w, pw_w, pw_b, bn_gamma, bn_beta, bn_mean, bn_var)

    ref = _reference(x, params)

    # Exact path (f32 slab + f32 MXU operands) -> tight tolerance, catches logic/mask bugs.
    out_f32 = jax.block_until_ready(
        separable_conv_block(x, params, mxu_dtype=jnp.float32))
    assert out_f32.shape == (N, Cout, H, W)
    err_f32 = float(jnp.max(jnp.abs(out_f32 - ref)))
    assert err_f32 < 5e-4, f"f32 path max abs err {err_f32}"

    # Default fast path (bf16 slab + bf16 MXU operands, f32 accumulate).
    out = jax.block_until_ready(separable_conv_block(x, params))
    assert out.shape == (N, Cout, H, W)
    err = float(jnp.max(jnp.abs(out - ref)))
    assert err < 1.5e-1, f"bf16 path max abs err {err}"

    print("KERNEL_OK")
</pallas_src>

<mosaic_0001>
module attributes {stable_mosaic.version = 11 : i64} {
  func.func @_sepconv_kernel(%arg0: i32, %arg1: i32, %arg2: memref<1x4x256xf32, #tpu.memory_space<vmem>>, %arg3: memref<1x256xi32, #tpu.memory_space<vmem>>, %arg4: memref<4x9xf32, #tpu.memory_space<vmem>>, %arg5: memref<8x4xf32, #tpu.memory_space<vmem>>, %arg6: memref<8x1xf32, #tpu.memory_space<vmem>>, %arg7: memref<1x8x256xf32, #tpu.memory_space<vmem>>, %arg8: memref<4x512xf32, #tpu.memory_space<vmem>>, %arg9: memref<4x256xf32, #tpu.memory_space<vmem>>) attributes {dimension_semantics = [#tpu.dimension_semantics<parallel>, #tpu.dimension_semantics<parallel>], iteration_bounds = array<i64: 2, 1>, scalar_prefetch = 0 : i64, scratch_operands = 2 : i64, tpu.core_type = #tpu.core_type<tc>, window_params = [{transform_indices = @transform_0, window_bounds = array<i64: 1, 4, 256>}, {pipeline_mode = #tpu.pipeline_mode<synchronous>, transform_indices = @transform_1, window_bounds = array<i64: 1, 256>}, {pipeline_mode = #tpu.pipeline_mode<synchronous>, transform_indices = @transform_2, window_bounds = array<i64: 4, 9>}, {pipeline_mode = #tpu.pipeline_mode<synchronous>, transform_indices = @transform_3, window_bounds = array<i64: 8, 4>}, {pipeline_mode = #tpu.pipeline_mode<synchronous>, transform_indices = @transform_4, window_bounds = array<i64: 8, 1>}, {transform_indices = @transform_5, window_bounds = array<i64: 1, 8, 256>}]} {
    %c0_i32 = arith.constant 0 : i32
    %0 = arith.cmpi eq, %arg1, %c0_i32 : i32
    %c0_i32_0 = arith.constant 0 : i32
    %1 = arith.cmpi eq, %arg1, %c0_i32_0 : i32
    %c0 = arith.constant 0 : index
    %c0_1 = arith.constant 0 : index
    %c0_2 = arith.constant 0 : index
    %2 = vector.load %arg2[%c0, %c0_1, %c0_2] : memref<1x4x256xf32, #tpu.memory_space<vmem>>, vector<1x4x256xf32>
    %3 = vector.shape_cast %2 : vector<1x4x256xf32> to vector<4x256xf32>
    %c0_3 = arith.constant 0 : index
    %c128 = arith.constant 128 : index
    %4 = vector.load %arg8[%c0_3, %c128] : memref<4x512xf32, #tpu.memory_space<vmem>>, vector<4x256xf32>
    tpu.vector_store %arg8[%c0_3, %c128], %3 {strides = array<i32>} : memref<4x512xf32, #tpu.memory_space<vmem>>, vector<4x256xf32>,
    %cst = arith.constant 0.000000e+00 : f32
    %5 = vector.broadcast %cst : f32 to vector<4x128xf32>
    %c0_4 = arith.constant 0 : index
    %c0_5 = arith.constant 0 : index
    %6 = vector.load %arg8[%c0_4, %c0_5] : memref<4x512xf32, #tpu.memory_space<vmem>>, vector<4x128xf32>
    tpu.vector_store %arg8[%c0_4, %c0_5], %5 {strides = array<i32>} : memref<4x512xf32, #tpu.memory_space<vmem>>, vector<4x128xf32>,
    %c0_6 = arith.constant 0 : index
    %c384 = arith.constant 384 : index
    %7 = vector.load %arg8[%c0_6, %c384] : memref<4x512xf32, #tpu.memory_space<vmem>>, vector<4x128xf32>
    tpu.vector_store %arg8[%c0_6, %c384], %5 {strides = array<i32>} : memref<4x512xf32, #tpu.memory_space<vmem>>, vector<4x128xf32>,
    %c0_7 = arith.constant 0 : index
    %c0_8 = arith.constant 0 : index
    %8 = vector.load %arg3[%c0_7, %c0_8] : memref<1x256xi32, #tpu.memory_space<vmem>>, vector<1x256xi32>
    %9 = tpu.iota {dimensions = array<i32: 1>} : vector<1x256xi32>
    %c0_i32_9 = arith.constant 0 : i32
    %10 = vector.broadcast %c0_i32_9 : i32 to vector<1x256xi32>
    %11 = arith.cmpi sgt, %8, %10 : vector<1x256xi32>
    %c15_i32 = arith.constant 15 : i32
    %12 = vector.broadcast %c15_i32 : i32 to vector<1x256xi32>
    %13 = arith.cmpi slt, %8, %12 : vector<1x256xi32>
    %c16_i32 = arith.constant 16 : i32
    %14 = vector.broadcast %c16_i32 : i32 to vector<1x256xi32>
    %15 = arith.cmpi slt, %9, %14 : vector<1x256xi32>
    %16 = vector.broadcast %0 : i1 to vector<1x256xi1>
    %17 = arith.andi %16, %15 : vector<1x256xi1>
    %cst_10 = arith.constant dense<true> : vector<1x256xi1>
    %18 = arith.xori %17, %cst_10 : vector<1x256xi1>
    %c240_i32 = arith.constant 240 : i32
    %19 = vector.broadcast %c240_i32 : i32 to vector<1x256xi32>
    %20 = arith.cmpi sge, %9, %19 : vector<1x256xi32>
    %21 = vector.broadcast %1 : i1 to vector<1x256xi1>
    %22 = arith.andi %21, %20 : vector<1x256xi1>
    %cst_11 = arith.constant dense<true> : vector<1x256xi1>
    %23 = arith.xori %22, %cst_11 : vector<1x256xi1>
    %c0_12 = arith.constant 0 : index
    %c0_13 = arith.constant 0 : index
    %24 = vector.load %arg4[%c0_12, %c0_13] : memref<4x9xf32, #tpu.memory_space<vmem>>, vector<4x9xf32>
    %c0_14 = arith.constant 0 : index
    %c112 = arith.constant 112 : index
    %25 = vector.load %arg8[%c0_14, %c112] : memref<4x512xf32, #tpu.memory_space<vmem>>, vector<4x256xf32>
    %cst_15 = arith.constant 0.000000e+00 : f32
    %26 = vector.shape_cast %18 : vector<1x256xi1> to vector<1x256xi1>
    %27 = vector.broadcast %26 : vector<1x256xi1> to vector<4x256xi1>
    %28 = vector.broadcast %cst_15 : f32 to vector<4x256xf32>
    %29 = arith.select %27, %25, %28 : vector<4x256xi1>, vector<4x256xf32>
    %30 = vector.extract_strided_slice %24 {offsets = [0, 1], sizes = [4, 1], strides = [1, 1]} : vector<4x9xf32> to vector<4x1xf32>
    %31 = vector.broadcast %30 : vector<4x1xf32> to vector<4x256xf32>
    %32 = arith.mulf %29, %31 : vector<4x256xf32>
    %c1_i32 = arith.constant 1 : i32
    %33 = tpu.dynamic_rotate %29 by %c1_i32 dim 1 : vector<4x256xf32>, i32 -> vector<4x256xf32>
    %cst_16 = arith.constant 0.000000e+00 : f32
    %34 = vector.shape_cast %11 : vector<1x256xi1> to vector<1x256xi1>
    %35 = vector.broadcast %34 : vector<1x256xi1> to vector<4x256xi1>
    %36 = vector.broadcast %cst_16 : f32 to vector<4x256xf32>
    %37 = arith.select %35, %33, %36 : vector<4x256xi1>, vector<4x256xf32>
    %38 = vector.extract_strided_slice %24 {offsets = [0, 0], sizes = [4, 1], strides = [1, 1]} : vector<4x9xf32> to vector<4x1xf32>
    %39 = vector.broadcast %38 : vector<4x1xf32> to vector<4x256xf32>
    %40 = arith.mulf %37, %39 : vector<4x256xf32>
    %c255_i32 = arith.constant 255 : i32
    %41 = tpu.dynamic_rotate %29 by %c255_i32 dim 1 : vector<4x256xf32>, i32 -> vector<4x256xf32>
    %cst_17 = arith.constant 0.000000e+00 : f32
    %42 = vector.shape_cast %13 : vector<1x256xi1> to vector<1x256xi1>
    %43 = vector.broadcast %42 : vector<1x256xi1> to vector<4x256xi1>
    %44 = vector.broadcast %cst_17 : f32 to vector<4x256xf32>
    %45 = arith.select %43, %41, %44 : vector<4x256xi1>, vector<4x256xf32>
    %46 = vector.extract_strided_slice %24 {offsets = [0, 2], sizes = [4, 1], strides = [1, 1]} : vector<4x9xf32> to vector<4x1xf32>
    %47 = vector.broadcast %46 : vector<4x1xf32> to vector<4x256xf32>
    %48 = arith.mulf %45, %47 : vector<4x256xf32>
    %49 = arith.addf %32, %40 : vector<4x256xf32>
    %50 = arith.addf %49, %48 : vector<4x256xf32>
    %c0_18 = arith.constant 0 : index
    %c128_19 = arith.constant 128 : index
    %51 = vector.load %arg8[%c0_18, %c128_19] : memref<4x512xf32, #tpu.memory_space<vmem>>, vector<4x256xf32>
    %52 = vector.extract_strided_slice %24 {offsets = [0, 4], sizes = [4, 1], strides = [1, 1]} : vector<4x9xf32> to vector<4x1xf32>
    %53 = vector.broadcast %52 : vector<4x1xf32> to vector<4x256xf32>
    %54 = arith.mulf %51, %53 : vector<4x256xf32>
    %c1_i32_20 = arith.constant 1 : i32
    %55 = tpu.dynamic_rotate %51 by %c1_i32_20 dim 1 : vector<4x256xf32>, i32 -> vector<4x256xf32>
    %cst_21 = arith.constant 0.000000e+00 : f32
    %56 = vector.shape_cast %11 : vector<1x256xi1> to vector<1x256xi1>
    %57 = vector.broadcast %56 : vector<1x256xi1> to vector<4x256xi1>
    %58 = vector.broadcast %cst_21 : f32 to vector<4x256xf32>
    %59 = arith.select %57, %55, %58 : vector<4x256xi1>, vector<4x256xf32>
    %60 = vector.extract_strided_slice %24 {offsets = [0, 3], sizes = [4, 1], strides = [1, 1]} : vector<4x9xf32> to vector<4x1xf32>
    %61 = vector.broadcast %60 : vector<4x1xf32> to vector<4x256xf32>
    %62 = arith.mulf %59, %61 : vector<4x256xf32>
    %c255_i32_22 = arith.constant 255 : i32
    %63 = tpu.dynamic_rotate %51 by %c255_i32_22 dim 1 : vector<4x256xf32>, i32 -> vector<4x256xf32>
    %cst_23 = arith.constant 0.000000e+00 : f32
    %64 = vector.shape_cast %13 : vector<1x256xi1> to vector<1x256xi1>
    %65 = vector.broadcast %64 : vector<1x256xi1> to vector<4x256xi1>
    %66 = vector.broadcast %cst_23 : f32 to vector<4x256xf32>
    %67 = arith.select %65, %63, %66 : vector<4x256xi1>, vector<4x256xf32>
    %68 = vector.extract_strided_slice %24 {offsets = [0, 5], sizes = [4, 1], strides = [1, 1]} : vector<4x9xf32> to vector<4x1xf32>
    %69 = vector.broadcast %68 : vector<4x1xf32> to vector<4x256xf32>
    %70 = arith.mulf %67, %69 : vector<4x256xf32>
    %71 = arith.addf %50, %54 : vector<4x256xf32>
    %72 = arith.addf %71, %62 : vector<4x256xf32>
    %73 = arith.addf %72, %70 : vector<4x256xf32>
    %c0_24 = arith.constant 0 : index
    %c144 = arith.constant 144 : index
    %74 = vector.load %arg8[%c0_24, %c144] : memref<4x512xf32, #tpu.memory_space<vmem>>, vector<4x256xf32>
    %cst_25 = arith.constant 0.000000e+00 : f32
    %75 = vector.shape_cast %23 : vector<1x256xi1> to vector<1x256xi1>
    %76 = vector.broadcast %75 : vector<1x256xi1> to vector<4x256xi1>
    %77 = vector.broadcast %cst_25 : f32 to vector<4x256xf32>
    %78 = arith.select %76, %74, %77 : vector<4x256xi1>, vector<4x256xf32>
    %79 = vector.extract_strided_slice %24 {offsets = [0, 7], sizes = [4, 1], strides = [1, 1]} : vector<4x9xf32> to vector<4x1xf32>
    %80 = vector.broadcast %79 : vector<4x1xf32> to vector<4x256xf32>
    %81 = arith.mulf %78, %80 : vector<4x256xf32>
    %c1_i32_26 = arith.constant 1 : i32
    %82 = tpu.dynamic_rotate %78 by %c1_i32_26 dim 1 : vector<4x256xf32>, i32 -> vector<4x256xf32>
    %cst_27 = arith.constant 0.000000e+00 : f32
    %83 = vector.shape_cast %11 : vector<1x256xi1> to vector<1x256xi1>
    %84 = vector.broadcast %83 : vector<1x256xi1> to vector<4x256xi1>
    %85 = vector.broadcast %cst_27 : f32 to vector<4x256xf32>
    %86 = arith.select %84, %82, %85 : vector<4x256xi1>, vector<4x256xf32>
    %87 = vector.extract_strided_slice %24 {offsets = [0, 6], sizes = [4, 1], strides = [1, 1]} : vector<4x9xf32> to vector<4x1xf32>
    %88 = vector.broadcast %87 : vector<4x1xf32> to vector<4x256xf32>
    %89 = arith.mulf %86, %88 : vector<4x256xf32>
    %c255_i32_28 = arith.constant 255 : i32
    %90 = tpu.dynamic_rotate %78 by %c255_i32_28 dim 1 : vector<4x256xf32>, i32 -> vector<4x256xf32>
    %cst_29 = arith.constant 0.000000e+00 : f32
    %91 = vector.shape_cast %13 : vector<1x256xi1> to vector<1x256xi1>
    %92 = vector.broadcast %91 : vector<1x256xi1> to vector<4x256xi1>
    %93 = vector.broadcast %cst_29 : f32 to vector<4x256xf32>
    %94 = arith.select %92, %90, %93 : vector<4x256xi1>, vector<4x256xf32>
    %95 = vector.extract_strided_slice %24 {offsets = [0, 8], sizes = [4, 1], strides = [1, 1]} : vector<4x9xf32> to vector<4x1xf32>
    %96 = vector.broadcast %95 : vector<4x1xf32> to vector<4x256xf32>
    %97 = arith.mulf %94, %96 : vector<4x256xf32>
    %98 = arith.addf %73, %81 : vector<4x256xf32>
    %99 = arith.addf %98, %89 : vector<4x256xf32>
    %100 = arith.addf %99, %97 : vector<4x256xf32>
    %c0_30 = arith.constant 0 : index
    %c0_31 = arith.constant 0 : index
    %101 = vector.load %arg5[%c0_30, %c0_31] : memref<8x4xf32, #tpu.memory_space<vmem>>, vector<8x4xf32>
    %cst_32 = arith.constant dense<0.000000e+00> : vector<8x256xf32>
    %102 = tpu.matmul %101, %100, %cst_32 {dimension_numbers = #tpu.dot_dimension_numbers<[1], [0], [0], [1], [0, 0, 1, 1], [], []>} : vector<8x4xf32>, vector<4x256xf32>, vector<8x256xf32> -> vector<8x256xf32>
    %c0_33 = arith.constant 0 : index
    %c0_34 = arith.constant 0 : index
    %103 = vector.load %arg6[%c0_33, %c0_34] : memref<8x1xf32, #tpu.memory_space<vmem>>, vector<8x1xf32>
    %104 = vector.broadcast %103 : vector<8x1xf32> to vector<8x256xf32>
    %105 = arith.addf %102, %104 : vector<8x256xf32>
    %c0_35 = arith.constant 0 : index
    %c0_36 = arith.constant 0 : index
    %c0_37 = arith.constant 0 : index
    %106 = vector.load %arg7[%c0_35, %c0_36, %c0_37] : memref<1x8x256xf32, #tpu.memory_space<vmem>>, vector<1x8x256xf32>
    %107 = vector.shape_cast %106 : vector<1x8x256xf32> to vector<8x256xf32>
    %108 = vector.shape_cast %105 : vector<8x256xf32> to vector<1x8x256xf32>
    tpu.vector_store %arg7[%c0_35, %c0_36, %c0_37], %108 {strides = array<i32>} : memref<1x8x256xf32, #tpu.memory_space<vmem>>, vector<1x8x256xf32>,
    return
  }
  func.func @transform_0(%arg0: i32, %arg1: i32) -> (i32, i32, i32) {
    %c0_i32 = arith.constant 0 : i32
    %c0_i32_0 = arith.constant 0 : i32
    return %arg0, %c0_i32, %arg1 : i32, i32, i32
  }
  func.func @transform_1(%arg0: i32, %arg1: i32) -> (i32, i32) {
    %c0_i32 = arith.constant 0 : i32
    %c0_i32_0 = arith.constant 0 : i32
    %c0_i32_1 = arith.constant 0 : i32
    return %c0_i32, %c0_i32_0 : i32, i32
  }
  func.func @transform_2(%arg0: i32, %arg1: i32) -> (i32, i32) {
    %c0_i32 = arith.constant 0 : i32
    %c0_i32_0 = arith.constant 0 : i32
    %c0_i32_1 = arith.constant 0 : i32
    return %c0_i32, %c0_i32_0 : i32, i32
  }
  func.func @transform_3(%arg0: i32, %arg1: i32) -> (i32, i32) {
    %c0_i32 = arith.constant 0 : i32
    %c0_i32_0 = arith.constant 0 : i32
    %c0_i32_1 = arith.constant 0 : i32
    return %c0_i32, %c0_i32_0 : i32, i32
  }
  func.func @transform_4(%arg0: i32, %arg1: i32) -> (i32, i32) {
    %c0_i32 = arith.constant 0 : i32
    %c0_i32_0 = arith.constant 0 : i32
    %c0_i32_1 = arith.constant 0 : i32
    return %c0_i32, %c0_i32_0 : i32, i32
  }
  func.func @transform_5(%arg0: i32, %arg1: i32) -> (i32, i32, i32) {
    %c0_i32 = arith.constant 0 : i32
    %c0_i32_0 = arith.constant 0 : i32
    return %arg0, %c0_i32, %arg1 : i32, i32, i32
  }
}

</mosaic_0001>

<llo_original>
// kernel: tpu_custom_call.1
$region0: #{tpu_custom_call.1}
  #allocation0 [shape = 'u32[]', space=smem, size = 0x4, offset = 0x4, fixed_abs, tag = 'smem constant byte address 0x4 - core index']
  #allocation1 [shape = 'u32[72,128]{1,0:T(1,128)}', space=vmem, size = 0x9000, scoped, tag = 'internal scratch']
  #allocation2 [shape = 'f32[4,512]{1,0:T(4,128)}', space=vmem, size = 0x2000, scoped, tag = 'scratch operand']
  #allocation3 [shape = 'f32[4,256]{1,0:T(4,128)}', space=vmem, size = 0x1000, scoped, tag = 'scratch operand']
  %s0 = inlined_call_operand.vmem [shape: f32[2,4,256], index: 0, kind: input, shape index: {}]
  %s1 = inlined_call_operand.hbm [shape: s32[1,256], index: 1, kind: input, shape index: {}]
  %s2 = inlined_call_operand.vmem [shape: f32[4,9], index: 2, kind: input, shape index: {}]
  %s3 = inlined_call_operand.vmem [shape: f32[8,4], index: 3, kind: input, shape index: {}]
  %s4 = inlined_call_operand.vmem [shape: f32[8,1], index: 4, kind: input, shape index: {}]
  %s5 = inlined_call_operand.hbm [shape: f32[2,8,256], index: 5, kind: output, shape index: {}]
  %s6 = sld [smem:[#allocation0]]
  $region57: #{tpu_custom_call.1} parent=0
    _
  %s8 = ssub.s32 1, %s6
  %s9 = scalar_select 0, %s8, %s6
  $region1: #{tpu_custom_call.1} parent=0
    #allocation4 [shape = 'u8[1024]{0}', space=vmem, size = 0x400, scoped, tag = 'input window, operand 1, single buffered']
    #allocation5 [shape = 's32[2]{0}', space=sflag, size = 0x8, scoped, tag = 'scoped memory for tpu_custom_call.1']
    #allocation6 [shape = 's32[2]{0}', space=sflag, size = 0x8, scoped, tag = 'scoped memory for tpu_custom_call.1']
    #allocation7 [shape = 'u8[16384]{0}', space=vmem, size = 0x4000, scoped, tag = 'output window, operand 0']
    %10 = vsyncpa [#allocation5], 0
    %11 = vsyncpa [#allocation6], 0
    %s12 = scalar_lea.sflag [#allocation6], 1
    %13 = vsyncpa %s12, 0
    loop: start=0, step=1, limit=4
    $region2: #{tpu_custom_call.1} parent=1 // loop_pre_header
      _
    $region3: #{tpu_custom_call.1} parent=1 // loop_header
      %s15 = sphi 0, %s19
      %p16 = scmp.ge.s32.totalorder %s15, 4
      %s22 = sphi 0, %s34
      %s23 = sphi 0, %s30
      %s24 = sphi 0, %s22
      %s25 = sphi 0, %s23
      %s26 = sphi 0, %s24
      %s27 = sphi 0, %s25
      %s39 = sphi 0, %s41
      %s42 = sphi 0, %s39
      %s43 = sphi 0, %s42
      %s59 = sphi 0, %s43
      %s63 = sphi 0, %s63
      %s65 = sphi 0, %s63
      %s66 = sphi 0, %s65
      %s80 = sphi 0, %s66
      %s84 = sphi 0, %s84
      %s86 = sphi 0, %s84
      %s87 = sphi 0, %s86
      %s101 = sphi 0, %s87
      %s105 = sphi 0, %s105
      %s107 = sphi 0, %s105
      %s108 = sphi 0, %s107
      %s122 = sphi 0, %s108
      %s126 = sphi 0, %s126
      %s128 = sphi 0, %s126
      %s129 = sphi 0, %s128
      %s143 = sphi 0, %s129
      %s151 = sphi 0, %s153
      %s154 = sphi 0, %s151
      %s155 = sphi 0, %s154
      %s171 = sphi 0, %s155
    $region4: #{tpu_custom_call.1} parent=1 // loop_header_branch
      %18 = sbr.rel (%p16) target = $region8
    $region5: #{tpu_custom_call.1} parent=1 // loop_body
      %s20 = ssub.s32 %s15, 1
      %s21 = ssub.s32 %s15, 2
      %s28 = sadd.s32 1, %s23
      %p29 = scmp.ge.s32.totalorder %s28, 1
      %s30 = scalar_select %p29, 0, %s28
      %s31 = sadd.s32 1, %s22
      %s32 = scalar_select %p29, %s31, %s22
      %p33 = scmp.ge.s32.totalorder %s32, 2
      %s34 = scalar_select %p33, 0, %s32
      %s35 = ssub.s32 %s22, %s34
      %s36 = ssub.s32 %s23, %s30
      %s37 = sor.u32 %s35, %s36
      %p38 = scmp.eq.s32.totalorder %s37, 0
      %s40 = sadd.s32 %s39, 1
      %s41 = scalar_select %p38, %s39, %s40
      %p44 = pneg %p38
      %p45 = scmp.eq.s32.totalorder %s15, 1
      %p46 = por %p44, %p45
      %p47 = scmp.ne.s32.totalorder %s39, %s42
      %p48 = scmp.eq.s32.totalorder %s15, 0
      %p49 = por %p47, %p48
      %p50 = scmp.ne.s32.totalorder %s39, %s42
      %p51 = scmp.eq.s32.totalorder %s20, 1
      %p52 = por %p50, %p51
      %p53 = scmp.ne.s32.totalorder %s42, %s43
      %p54 = scmp.eq.s32.totalorder %s20, 0
      %p55 = por %p53, %p54
      %p56 = scmp.ne.s32.totalorder %s42, %s43
      %p57 = scmp.eq.s32.totalorder %s21, 1
      %p58 = por %p56, %p57
      %p60 = scmp.ne.s32.totalorder %s43, %s59
      %p61 = scmp.eq.s32.totalorder %s21, 0
      %p62 = por %p60, %p61
      %s64 = sadd.s32 %s63, 1
      %p67 = scmp.eq.s32.totalorder %s15, 1
      %p68 = scmp.ne.s32.totalorder %s63, %s65
      %p69 = scmp.eq.s32.totalorder %s15, 0
      %p70 = por %p68, %p69
      %p71 = scmp.ne.s32.totalorder %s63, %s65
      %p72 = scmp.eq.s32.totalorder %s20, 1
      %p73 = por %p71, %p72
      %p74 = scmp.ne.s32.totalorder %s65, %s66
      %p75 = scmp.eq.s32.totalorder %s20, 0
      %p76 = por %p74, %p75
      %p77 = scmp.ne.s32.totalorder %s65, %s66
      %p78 = scmp.eq.s32.totalorder %s21, 1
      %p79 = por %p77, %p78
      %p81 = scmp.ne.s32.totalorder %s66, %s80
      %p82 = scmp.eq.s32.totalorder %s21, 0
      %p83 = por %p81, %p82
      %s85 = sadd.s32 %s84, 1
      %p88 = scmp.eq.s32.totalorder %s15, 1
      %p89 = scmp.ne.s32.totalorder %s84, %s86
      %p90 = scmp.eq.s32.totalorder %s15, 0
      %p91 = por %p89, %p90
      %p92 = scmp.ne.s32.totalorder %s84, %s86
      %p93 = scmp.eq.s32.totalorder %s20, 1
      %p94 = por %p92, %p93
      %p95 = scmp.ne.s32.totalorder %s86, %s87
      %p96 = scmp.eq.s32.totalorder %s20, 0
      %p97 = por %p95, %p96
      %p98 = scmp.ne.s32.totalorder %s86, %s87
      %p99 = scmp.eq.s32.totalorder %s21, 1
      %p100 = por %p98, %p99
      %p102 = scmp.ne.s32.totalorder %s87, %s101
      %p103 = scmp.eq.s32.totalorder %s21, 0
      %p104 = por %p102, %p103
      %s106 = sadd.s32 %s105, 1
      %p109 = scmp.eq.s32.totalorder %s15, 1
      %p110 = scmp.ne.s32.totalorder %s105, %s107
      %p111 = scmp.eq.s32.totalorder %s15, 0
      %p112 = por %p110, %p111
      %p113 = scmp.ne.s32.totalorder %s105, %s107
      %p114 = scmp.eq.s32.totalorder %s20, 1
      %p115 = por %p113, %p114
      %p116 = scmp.ne.s32.totalorder %s107, %s108
      %p117 = scmp.eq.s32.totalorder %s20, 0
      %p118 = por %p116, %p117
      %p119 = scmp.ne.s32.totalorder %s107, %s108
      %p120 = scmp.eq.s32.totalorder %s21, 1
      %p121 = por %p119, %p120
      %p123 = scmp.ne.s32.totalorder %s108, %s122
      %p124 = scmp.eq.s32.totalorder %s21, 0
      %p125 = por %p123, %p124
      %s127 = sadd.s32 %s126, 1
      %p130 = scmp.eq.s32.totalorder %s15, 1
      %p131 = scmp.ne.s32.totalorder %s126, %s128
      %p132 = scmp.eq.s32.totalorder %s15, 0
      %p133 = por %p131, %p132
      %p134 = scmp.ne.s32.totalorder %s126, %s128
      %p135 = scmp.eq.s32.totalorder %s20, 1
      %p136 = por %p134, %p135
      %p137 = scmp.ne.s32.totalorder %s128, %s129
      %p138 = scmp.eq.s32.totalorder %s20, 0
      %p139 = por %p137, %p138
      %p140 = scmp.ne.s32.totalorder %s128, %s129
      %p141 = scmp.eq.s32.totalorder %s21, 1
      %p142 = por %p140, %p141
      %p144 = scmp.ne.s32.totalorder %s129, %s143
      %p145 = scmp.eq.s32.totalorder %s21, 0
      %p146 = por %p144, %p145
      %s147 = ssub.s32 %s22, %s34
      %s148 = ssub.s32 %s23, %s30
      %s149 = sor.u32 %s147, %s148
      %p150 = scmp.eq.s32.totalorder %s149, 0
      %s152 = sadd.s32 %s151, 1
      %s153 = scalar_select %p150, %s151, %s152
      %p156 = pneg %p150
      %p157 = scmp.eq.s32.totalorder %s15, 1
      %p158 = por %p156, %p157
      %p159 = scmp.ne.s32.totalorder %s151, %s154
      %p160 = scmp.eq.s32.totalorder %s15, 0
      %p161 = por %p159, %p160
      %p162 = scmp.ne.s32.totalorder %s151, %s154
      %p163 = scmp.eq.s32.totalorder %s20, 1
      %p164 = por %p162, %p163
      %p165 = scmp.ne.s32.totalorder %s154, %s155
      %p166 = scmp.eq.s32.totalorder %s20, 0
      %p167 = por %p165, %p166
      %p168 = scmp.ne.s32.totalorder %s154, %s155
      %p169 = scmp.eq.s32.totalorder %s21, 1
      %p170 = por %p168, %p169
      %p172 = scmp.ne.s32.totalorder %s155, %s171
      %p173 = scmp.eq.s32.totalorder %s21, 0
      %p174 = por %p172, %p173
      %p175 = scmp.le.s32.totalorder 1, %s15
      %p176 = scmp.lt.s32.totalorder %s15, 3
      %p177 = pnand %p175, %p176
      %p178 = pneg %p177
      // Predicated region
      $region9: #{tpu_custom_call.1} parent=5 // pred_check
        _
      $region10: #{tpu_custom_call.1} parent=5 // pred_check_branch
        %180 = sbr.rel (%p177) target = $region12
      $region11: #{tpu_custom_call.1} parent=5 // pred_region
        %s181 = ssub.s32 %s15, 1
        // Predicated region
        $region13: #{tpu_custom_call.1} parent=11 // pred_check
          %p182 = pneg %p76
        $region14: #{tpu_custom_call.1} parent=11 // pred_check_branch
          %184 = sbr.rel (%p182) target = $region16
        $region15: #{tpu_custom_call.1} parent=11 // pred_region
          %186 = vsyncadd [#allocation5], 0
          %s188 = sshll.u32 %s1, 4
          %s189 = int_to_ptr.hbm [resolvable:$true] %s188
          %s190 = sshll.u32 [#allocation4], 4
          %s191 = int_to_ptr.vmem [resolvable:$true] %s190
          %193 = dma.hbm_to_vmem [thread:$0]  %s189, 32, %s191, [#allocation5]
        $region16: #{tpu_custom_call.1} parent=11 // pred_fallthru
          _
        // Predicated region
        $region17: #{tpu_custom_call.1} parent=11 // pred_check
          %p194 = pneg %p97
        $region18: #{tpu_custom_call.1} parent=11 // pred_check_branch
          %196 = sbr.rel (%p194) target = $region20
        $region19: #{tpu_custom_call.1} parent=11 // pred_region
          _
        $region20: #{tpu_custom_call.1} parent=11 // pred_fallthru
          _
        // Predicated region
        $region21: #{tpu_custom_call.1} parent=11 // pred_check
          %p197 = pneg %p118
        $region22: #{tpu_custom_call.1} parent=11 // pred_check_branch
          %199 = sbr.rel (%p197) target = $region24
        $region23: #{tpu_custom_call.1} parent=11 // pred_region
          _
        $region24: #{tpu_custom_call.1} parent=11 // pred_fallthru
          _
        // Predicated region
        $region25: #{tpu_custom_call.1} parent=11 // pred_check
          %p200 = pneg %p139
        $region26: #{tpu_custom_call.1} parent=11 // pred_check_branch
          %202 = sbr.rel (%p200) target = $region28
        $region27: #{tpu_custom_call.1} parent=11 // pred_region
          _
        $region28: #{tpu_custom_call.1} parent=11 // pred_fallthru
          _
      $region12: #{tpu_custom_call.1} parent=5 // pred_fallthru
        _
      %p203 = scmp.lt.s32.totalorder %s15, 2
      // Predicated region
      $region29: #{tpu_custom_call.1} parent=5 // pred_check
        %p204 = pneg %p203
      $region30: #{tpu_custom_call.1} parent=5 // pred_check_branch
        %206 = sbr.rel (%p204) target = $region32
      $region31: #{tpu_custom_call.1} parent=5 // pred_region
        // Predicated region
        $region33: #{tpu_custom_call.1} parent=31 // pred_check
          %p207 = pneg %p49
        $region34: #{tpu_custom_call.1} parent=31 // pred_check_branch
          %209 = sbr.rel (%p207) target = $region36
        $region35: #{tpu_custom_call.1} parent=31 // pred_region
          %s210 = smul.u32 2, %s23
          %p211 = scmp.lt.s32.totalorder %s22, 1
          %s212 = scalar_select %p211, %s22, 1
          %p213 = scmp.lt.s32.totalorder %s210, 1
          %s214 = scalar_select %p213, %s210, 1
          %s215 = smul.addr %s212, 2
          %s216 = sadd.s32 %s214, %s215
          %s217 = smul.addr %s216, 4
          %s218 = scalar_lea.vmem %s0, %s217
          %s219 = smul.u32 2, %s23
        $region36: #{tpu_custom_call.1} parent=31 // pred_fallthru
          _
      $region32: #{tpu_custom_call.1} parent=5 // pred_fallthru
        _
      %p220 = scmp.le.s32.totalorder 1, %s15
      %p221 = scmp.lt.s32.totalorder %s15, 3
      %p222 = pnand %p220, %p221
      %p223 = pneg %p222
      // Predicated region
      $region37: #{tpu_custom_call.1} parent=5 // pred_check
        _
      $region38: #{tpu_custom_call.1} parent=5 // pred_check_branch
        %225 = sbr.rel (%p222) target = $region40
      $region39: #{tpu_custom_call.1} parent=5 // pred_region
        %s226 = ssub.s32 %s15, 1
        // Predicated region
        $region41: #{tpu_custom_call.1} parent=39 // pred_check
          %p227 = pneg %p76
        $region42: #{tpu_custom_call.1} parent=39 // pred_check_branch
          %229 = sbr.rel (%p227) target = $region44
        $region43: #{tpu_custom_call.1} parent=39 // pred_region
          %231 = dma.done [#allocation5], 32
        $region44: #{tpu_custom_call.1} parent=39 // pred_fallthru
          _
        %s232 = smul.u32 2, %s25
        %p233 = scmp.lt.s32.totalorder %s24, 1
        %s234 = scalar_select %p233, %s24, 1
        %p235 = scmp.lt.s32.totalorder %s232, 1
        %s236 = scalar_select %p235, %s232, 1
        %s237 = smul.addr %s234, 2
        %s238 = sadd.s32 %s236, %s237
        %s239 = smul.addr %s238, 4
        %s240 = scalar_lea.vmem %s0, %s239
        %p241 = pneg %p55
        %p242 = pneg %p52
        %p243 = pneg %p76
        %p244 = pneg %p73
        %p245 = pneg %p97
        %p246 = pneg %p94
        %p247 = pneg %p118
        %p248 = pneg %p115
        %p249 = pneg %p139
        %p250 = pneg %p136
        %p251 = pneg %p167
        %p252 = pneg %p164
        %s253 = sand.u32 %s154, 1
        %s254 = scalar_lea.sflag [#allocation6], %s253
        %s255 = sand.u32 %s154, 1
        %s256 = smul.addr %s255, 16
        %s257 = scalar_lea.vmem [#allocation7], %s256
        %s258 = smul.u32 2, %s25
        %p259 = scmp.lt.s32.totalorder %s24, 1
        %s260 = scalar_select %p259, %s24, 1
        %p261 = scmp.lt.s32.totalorder %s258, 1
        %s262 = scalar_select %p261, %s258, 1
        %s263 = smul.addr %s260, 2
        %s264 = sadd.s32 %s262, %s263
        %s265 = smul.addr %s264, 4
        %s266 = scalar_lea.vmem %s0, %s265
        %s267 = smul.u32 2, %s25
        %s268 = smul.u32 2, %s25
        %p269 = scmp.eq.s32.totalorder %s25, 0
        %v270 = vld [vmem:[%s266] sm:$0xff]
        %271 = vst [vmem:[#allocation2 + $0x4] sm:$0xff] %v270
        %272 = vst [vmem:[#allocation2] sm:$0xf] 0.0
        %273 = vst [vmem:[#allocation2 + $0xc] sm:$0xf] 0.0
        %v274 = vld [vmem:[#allocation4] sm:$0x3]
        %v275 = vlaneseq
        %v276 = vand.u32 %v275, 127
        %v277 = vadd.s32 %v276, 128
        %vm278 = vcmp.gt.s32.totalorder %v274, 0
        %vm279 = vcmp.lt.s32.totalorder %v274, 15
        %vm280 = vcmp.lt.s32.totalorder %v276, 16
        %vm281 = vcmp.lt.s32.totalorder %v277, 16
        %s282 = scalar_select %p269, 1, 0
        %v283 = vstv %s282
        %vm284 = vcmp.eq.s32.totalorder %v283, 1
        %vm285 = vmand %vm284, %vm280
        %vm286 = vmand %vm284, %vm281
        %vm287 = vmxor %vm285, 1
        %vm288 = vmxor %vm286, 1
        %vm289 = vcmp.ge.s32.totalorder %v276, 240
        %vm290 = vcmp.ge.s32.totalorder %v277, 240
        %vm291 = vmand %vm284, %vm289
        %vm292 = vmand %vm284, %vm290
        %vm293 = vmxor %vm291, 1
        %vm294 = vmxor %vm292, 1
        %v295 = vld [vmem:[%s2] sm:$0xf]
        %v296 = vld [vmem:[#allocation2] sm:$0xff]
        %v297 = vld [vmem:[#allocation2 + $0x8] sm:$0xf]
        %v298 = vsel %vm287, 1, 0
        %v299 = vsel %vm288, 1, 0
        %vm300 = vcmp.eq.s32.totalorder %v298, 1
        %vm301 = vcmp.eq.s32.totalorder %v299, 1
        %304 = vst [vmem:[#allocation1] ss:$2 sm:$0xff] %v296
        %s305 = scalar_lea.vmem [#allocation1], 16
        %306 = vst [vmem:[%s305] ss:$2 sm:$0xff] %v297
        %v307 = vld.sshfl [vmem:[#allocation1] sm:$0xff pattern:$0x75316420]
        %v308 = vld.sshfl [vmem:[#allocation1 + $0x8] sm:$0xff pattern:$0x75316420]
        %v309 = vld.sshfl [vmem:[#allocation1 + $0x10] sm:$0xff pattern:$0x75316420]
        %310 = vrot.lane.b32.xlu0 %v307, 16
        %v311 = vpop.permute.xlu0 %310
        %312 = vrot.lane.b32.xlu0 %v308, 16
        %v313 = vpop.permute.xlu0 %312
        %314 = vrot.lane.b32.xlu0 %v309, 16
        %v315 = vpop.permute.xlu0 %314
        %vm316 = vcmask 130048
        %v317 = vsel %vm316, %v311, %v313
        %v318 = vsel %vm316, %v313, %v315
        %v321 = vsel %vm300, %v317, 0.0
        %v322 = vsel %vm301, %v318, 0.0
        %324 = vset.pattern.permute.xlu0 1
        %325 = vperm.xlu0 %324, %v295
        %v326 = vpop.permute.xlu0 %325
        %v328 = vmul.f32 %v321, %v326
        %v329 = vmul.f32 %v322, %v326
        %330 = vrot.lane.b32.xlu0 %v321, 1
        %v331 = vpop.permute.xlu0 %330
        %332 = vrot.lane.b32.xlu0 %v322, 1
        %v333 = vpop.permute.xlu0 %332
        %vm334 = vcmp.lt.s32.totalorder %v276, 1
        %v335 = vsel %vm334, %v331, %v333
        %v336 = vsel %vm334, %v333, %v331
        %v337 = vsel %vm278, 1, 0
        %v338 = vperm.slane %v337, 0
        %v339 = vperm.slane %v337, 1
        %vm340 = vcmp.eq.s32.totalorder %v338, 1
        %vm341 = vcmp.eq.s32.totalorder %v339, 1
        %v342 = vsel %vm340, %v336, 0.0
        %v343 = vsel %vm341, %v335, 0.0
        %344 = vset.pattern.permute.xlu0 0
        %345 = vperm.xlu0 %344, %v295
        %v346 = vpop.permute.xlu0 %345
        %v348 = vmul.f32 %v342, %v346
        %v349 = vmul.f32 %v343, %v346
        %350 = vrot.lane.b32.xlu0 %v321, 127
        %v351 = vpop.permute.xlu0 %350
        %352 = vrot.lane.b32.xlu0 %v322, 127
        %v353 = vpop.permute.xlu0 %352
        %vm354 = vcmp.lt.s32.totalorder %v276, 127
        %v355 = vsel %vm354, %v351, %v353
        %v356 = vsel %vm354, %v353, %v351
        %v357 = vsel %vm279, 1, 0
        %v358 = vperm.slane %v357, 0
        %v359 = vperm.slane %v357, 1
        %vm360 = vcmp.eq.s32.totalorder %v358, 1
        %vm361 = vcmp.eq.s32.totalorder %v359, 1
        %v362 = vsel %vm360, %v355, 0.0
        %v363 = vsel %vm361, %v356, 0.0
        %364 = vset.pattern.permute.xlu0 2
        %365 = vperm.xlu0 %364, %v295
        %v366 = vpop.permute.xlu0 %365
        %v368 = vmul.f32 %v362, %v366
        %v369 = vmul.f32 %v363, %v366
        %v370 = vadd.f32 %v328, %v348
        %v371 = vadd.f32 %v329, %v349
        %v372 = vadd.f32 %v370, %v368
        %v373 = vadd.f32 %v371, %v369
        %v374 = vld [vmem:[#allocation2 + $0x4] sm:$0xff]
        %375 = vset.pattern.permute.xlu0 4
        %376 = vperm.xlu0 %375, %v295
        %v377 = vpop.permute.xlu0 %376
        %v379 = vunpack.c.l.s4 839922192
        %v380 = vunpack.c.0.s8 %v379
        %v381 = vperm.slane %v377, %v380
        %v383 = vmul.f32 %v374, %v381
        %385 = vst [vmem:[#allocation1] ss:$2 sm:$0xff] %v374
        %v386 = vld.sshfl [vmem:[#allocation1] sm:$0xff pattern:$0x75316420]
        %v387 = vld.sshfl [vmem:[#allocation1 + $0x8] sm:$0xff pattern:$0x75316420]
        %390 = vrot.lane.b32.xlu0 %v386, 1
        %v391 = vpop.permute.xlu0 %390
        %392 = vrot.lane.b32.xlu0 %v387, 1
        %v393 = vpop.permute.xlu0 %392
        %v394 = vsel %vm334, %v391, %v393
        %v395 = vsel %vm334, %v393, %v391
        %v396 = vsel %vm340, %v395, 0.0
        %v397 = vsel %vm341, %v394, 0.0
        %398 = vset.pattern.permute.xlu0 3
        %399 = vperm.xlu0 %398, %v295
        %v400 = vpop.permute.xlu0 %399
        %v402 = vmul.f32 %v396, %v400
        %v403 = vmul.f32 %v397, %v400
        %404 = vst [vmem:[#allocation1] ss:$2 sm:$0xff] %v374
        %v405 = vld.sshfl [vmem:[#allocation1] sm:$0xff pattern:$0x75316420]
        %v406 = vld.sshfl [vmem:[#allocation1 + $0x8] sm:$0xff pattern:$0x75316420]
        %409 = vrot.lane.b32.xlu0 %v405, 127
        %v410 = vpop.permute.xlu0 %409
        %411 = vrot.lane.b32.xlu0 %v406, 127
        %v412 = vpop.permute.xlu0 %411
        %v413 = vsel %vm354, %v410, %v412
        %v414 = vsel %vm354, %v412, %v410
        %v415 = vsel %vm360, %v413, 0.0
        %v416 = vsel %vm361, %v414, 0.0
        %417 = vset.pattern.permute.xlu0 5
        %418 = vperm.xlu0 %417, %v295
        %v419 = vpop.permute.xlu0 %418
        %v421 = vmul.f32 %v415, %v419
        %v422 = vmul.f32 %v416, %v419
        %424 = vst [vmem:[#allocation1] ss:$2 sm:$0xff] %v383
        %v425 = vld.sshfl [vmem:[#allocation1] sm:$0xff pattern:$0x75316420]
        %v426 = vld.sshfl [vmem:[#allocation1 + $0x8] sm:$0xff pattern:$0x75316420]
        %v429 = vadd.f32 %v372, %v425
        %v430 = vadd.f32 %v373, %v426
        %v431 = vadd.f32 %v429, %v402
        %v432 = vadd.f32 %v430, %v403
        %v433 = vadd.f32 %v431, %v421
        %v434 = vadd.f32 %v432, %v422
        %v435 = vld [vmem:[#allocation2 + $0x4] sm:$0xff]
        %v436 = vld [vmem:[#allocation2 + $0xc] sm:$0xf]
        %v437 = vsel %vm293, 1, 0
        %v438 = vsel %vm294, 1, 0
        %vm439 = vcmp.eq.s32.totalorder %v437, 1
        %vm440 = vcmp.eq.s32.totalorder %v438, 1
        %443 = vst [vmem:[#allocation1] ss:$2 sm:$0xff] %v435
        %s444 = scalar_lea.vmem [#allocation1], 16
        %445 = vst [vmem:[%s444] ss:$2 sm:$0xff] %v436
        %v446 = vld.sshfl [vmem:[#allocation1] sm:$0xff pattern:$0x75316420]
        %v447 = vld.sshfl [vmem:[#allocation1 + $0x8] sm:$0xff pattern:$0x75316420]
        %v448 = vld.sshfl [vmem:[#allocation1 + $0x10] sm:$0xff pattern:$0x75316420]
        %449 = vrot.lane.b32.xlu0 %v446, 112
        %v450 = vpop.permute.xlu0 %449
        %451 = vrot.lane.b32.xlu0 %v447, 112
        %v452 = vpop.permute.xlu0 %451
        %453 = vrot.lane.b32.xlu0 %v448, 112
        %v454 = vpop.permute.xlu0 %453
        %vm455 = vcmask 916480
        %v456 = vsel %vm455, %v450, %v452
        %v457 = vsel %vm455, %v452, %v454
        %v460 = vsel %vm439, %v456, 0.0
        %v461 = vsel %vm440, %v457, 0.0
        %462 = vset.pattern.permute.xlu0 7
        %463 = vperm.xlu0 %462, %v295
        %v464 = vpop.permute.xlu0 %463
        %v466 = vmul.f32 %v460, %v464
        %v467 = vmul.f32 %v461, %v464
        %468 = vrot.lane.b32.xlu0 %v460, 1
        %v469 = vpop.permute.xlu0 %468
        %470 = vrot.lane.b32.xlu0 %v461, 1
        %v471 = vpop.permute.xlu0 %470
        %v472 = vsel %vm334, %v469, %v471
        %v473 = vsel %vm334, %v471, %v469
        %v474 = vsel %vm340, %v473, 0.0
        %v475 = vsel %vm341, %v472, 0.0
        %476 = vset.pattern.permute.xlu0 6
        %477 = vperm.xlu0 %476, %v295
        %v478 = vpop.permute.xlu0 %477
        %v480 = vmul.f32 %v474, %v478
        %v481 = vmul.f32 %v475, %v478
        %482 = vrot.lane.b32.xlu0 %v460, 127
        %v483 = vpop.permute.xlu0 %482
        %484 = vrot.lane.b32.xlu0 %v461, 127
        %v485 = vpop.permute.xlu0 %484
        %v486 = vsel %vm354, %v483, %v485
        %v487 = vsel %vm354, %v485, %v483
        %v488 = vsel %vm360, %v486, 0.0
        %v489 = vsel %vm361, %v487, 0.0
        %490 = vset.pattern.permute.xlu0 8
        %491 = vperm.xlu0 %490, %v295
        %v492 = vpop.permute.xlu0 %491
        %v494 = vmul.f32 %v488, %v492
        %v495 = vmul.f32 %v489, %v492
        %v496 = vadd.f32 %v433, %v466
        %v497 = vadd.f32 %v434, %v467
        %v498 = vadd.f32 %v496, %v480
        %v499 = vadd.f32 %v497, %v481
        %v500 = vadd.f32 %v498, %v494
        %v501 = vadd.f32 %v499, %v495
        %v502 = vld [vmem:[%s3] sm:$0xff]
        %v503 = vld [vmem:[%s4] sm:$0xff]
        %505 = vset.pattern.permute.xlu0 0
        %506 = vperm.xlu0 %505, %v503
        %v507 = vpop.permute.xlu0 %506
        %vm509 = vcmask 31744
        %v511 = vsel %vm509, %v502, 0
        %vm513 = vcmask 1043456
        %v515 = vsel %vm513, %v500, 0
        %v518 = vsel %vm513, %v501, 0
        %520 = vmatpush.msra.mxu0 0.0
        %521 = vmatpush.msra.mxu0 0.0
        %522 = vmatpush.msra.mxu0 0.0
        %523 = vmatpush.msra.mxu0 0.0
        %524 = vmatpush.msra.mxu0 0.0
        %525 = vmatpush.msra.mxu0 0.0
        %526 = vmatpush.msra.mxu0 0.0
        %527 = vmatpush.msra.mxu0 0.0
        %528 = vmatpush.msra.mxu0 0.0
        %529 = vmatpush.msra.mxu0 0.0
        %530 = vmatpush.msra.mxu0 0.0
        %531 = vmatpush.msra.mxu0 0.0
        %532 = vmatpush.msra.mxu0 0.0
        %533 = vmatpush.msra.mxu0 0.0
        %534 = vmatpush.msra.mxu0 0.0
        %535 = vmatpush.msra.mxu0 %v515
        %536 = vmatmul.f32.gmra.mxu0 %v511
        %v537 = vpop.f32.mrf.mxu0
        %v538 = vadd.f32 %v507, %v537
        %539 = vdwg.mxu0
        %540 = vmatpush.msra.mxu0 0.0
        %541 = vmatpush.msra.mxu0 0.0
        %542 = vmatpush.msra.mxu0 0.0
        %543 = vmatpush.msra.mxu0 0.0
        %544 = vmatpush.msra.mxu0 0.0
        %545 = vmatpush.msra.mxu0 0.0
        %546 = vmatpush.msra.mxu0 0.0
        %547 = vmatpush.msra.mxu0 0.0
        %548 = vmatpush.msra.mxu0 0.0
        %549 = vmatpush.msra.mxu0 0.0
        %550 = vmatpush.msra.mxu0 0.0
        %551 = vmatpush.msra.mxu0 0.0
        %552 = vmatpush.msra.mxu0 0.0
        %553 = vmatpush.msra.mxu0 0.0
        %554 = vmatpush.msra.mxu0 0.0
        %555 = vmatpush.msra.mxu0 %v518
        %556 = vmatmul.f32.gmra.mxu0 %v511
        %v557 = vpop.f32.mrf.mxu0
        %v558 = vadd.f32 %v507, %v557
        %559 = vdwg.mxu0
        %560 = vst [vmem:[%s257] sm:$0xff] %v538
        %561 = vst [vmem:[%s257 + $0x8] sm:$0xff] %v558
        %s562 = sand.u32 %s154, 1
        %s563 = scalar_lea.sflag [#allocation6], %s562
        %s564 = sand.u32 %s154, 1
        %s565 = smul.addr %s564, 16
        %s566 = scalar_lea.vmem [#allocation7], %s565
        // Predicated region
        $region45: #{tpu_custom_call.1} parent=39 // pred_check
          %p567 = pneg %p164
        $region46: #{tpu_custom_call.1} parent=39 // pred_check_branch
          %569 = sbr.rel (%p567) target = $region48
        $region47: #{tpu_custom_call.1} parent=39 // pred_region
          %s570 = smul.u32 2, %s25
          %572 = vsyncadd %s563, 0
          %s573 = smul.addr %s24, 2
          %s574 = sadd.s32 %s570, %s573
          %s575 = smul.addr %s574, 8
          %s576 = scalar_lea.hbm %s5, %s575
          %s578 = sshll.u32 %s566, 4
          %s579 = int_to_ptr.vmem [resolvable:$true] %s578
          %s580 = sshll.u32 %s576, 4
          %s581 = int_to_ptr.hbm [resolvable:$true] %s580
          %583 = dma.vmem_to_hbm [thread:$0]  %s579, 256, %s581, %s563
        $region48: #{tpu_custom_call.1} parent=39 // pred_fallthru
          _
      $region40: #{tpu_custom_call.1} parent=5 // pred_fallthru
        _
      %p584 = scmp.le.s32.totalorder 2, %s15
      // Predicated region
      $region49: #{tpu_custom_call.1} parent=5 // pred_check
        %p585 = pneg %p584
      $region50: #{tpu_custom_call.1} parent=5 // pred_check_branch
        %587 = sbr.rel (%p585) target = $region52
      $region51: #{tpu_custom_call.1} parent=5 // pred_region
        %s588 = ssub.s32 %s15, 2
        // Predicated region
        $region53: #{tpu_custom_call.1} parent=51 // pred_check
          %p589 = pneg %p170
        $region54: #{tpu_custom_call.1} parent=51 // pred_check_branch
          %591 = sbr.rel (%p589) target = $region56
        $region55: #{tpu_custom_call.1} parent=51 // pred_region
          %s592 = sand.u32 %s155, 1
          %s593 = scalar_lea.sflag [#allocation6], %s592
          %s594 = sand.u32 %s155, 1
          %s595 = smul.addr %s594, 16
          %s596 = scalar_lea.vmem [#allocation7], %s595
          %598 = dma.done %s593, 256
        $region56: #{tpu_custom_call.1} parent=51 // pred_fallthru
          _
      $region52: #{tpu_custom_call.1} parent=5 // pred_fallthru
        _
    $region6: #{tpu_custom_call.1} parent=1 // loop_footer
      %s19 = sadd.s32 1, %s15
    $region7: #{tpu_custom_call.1} parent=1 // loop_footer_branch
      %14 = sbr.rel target = $region3
    $region8: #{tpu_custom_call.1} parent=1 // loop_exit
      _
    %599 = vsyncpa [#allocation5], 1
    %s600 = scalar_lea.sflag [#allocation5], 1
    %601 = vsyncpa %s600, 1
    %602 = vsyncpa [#allocation6], 1
    %s603 = scalar_lea.sflag [#allocation6], 1
    %604 = vsyncpa %s603, 1

</llo_original>
